<compile_context>
chip_gen: v7x
topology: tpu7x:2x2x1
jax: 0.10.0
libtpu: 0.0.40
codegen_flags: <defaults>
</compile_context>

<pallas_src>
import functools
import math

import jax
import jax.numpy as jnp
from jax.experimental import pallas as pl
from jax.experimental.pallas import tpu as pltpu


def _round_up(a, b):
    return (a + b - 1) // b * b


def _sublane_multiple(dtype):
    # f32 min tile is (8, 128); sub-32-bit dtypes pack along sublanes (bf16 -> 16).
    return max(8, 32 // jnp.dtype(dtype).itemsize)


def _pick_hidden_chunk(H, max_chunk):
    """Largest multiple of 128 that divides H and is <= max_chunk (else H)."""
    if H <= max_chunk or H % 128 != 0:
        return H
    th = (max_chunk // 128) * 128
    while th >= 128:
        if H % th == 0:
            return th
        th -= 128
    return H


def _vmem_limit_bytes():
    # Raise the scoped-VMEM cap above the 32 MiB default so resident weights +
    # large activation tiles fit; stay below the physical capacity of the chip
    # (128 MiB on v5e/v6e, 64 MiB per TensorCore on v7x).
    try:
        cap = getattr(pltpu.get_tpu_info(), "vmem_capacity_bytes", None)
        if cap:
            return min(int(cap * 0.9), 128 * 1024 * 1024)
    except Exception:
        pass
    return 64 * 1024 * 1024  # conservative fallback that fits every generation


def _mlp_kernel(x_ref, w_fc_ref, b_fc_ref, w_proj_ref, b_proj_ref, o_ref,
                acc_ref, *, hidden_chunk, n_chunks):
    """One (tm, C) output row tile: fused c_fc -> GELU(tanh) -> c_proj."""
    k0 = math.sqrt(2.0 / math.pi)
    acc_ref[...] = jnp.zeros_like(acc_ref)
    x = x_ref[...]
    for c in range(n_chunks):                # static trip count -> fully unrolled
        lo = c * hidden_chunk
        hi = lo + hidden_chunk
        # c_fc chunk: (tm, C) @ (C, th) + (1, th), f32 accumulation on the MXU.
        h = jnp.dot(x, w_fc_ref[:, lo:hi], preferred_element_type=jnp.float32)
        h = h + b_fc_ref[:, lo:hi].astype(jnp.float32)
        # GELU, tanh approximation (== nn.GELU(approximate='tanh')), kept in f32
        # (tanh goes to the EUP slot and is largely hidden behind the matmuls).
        g = 0.5 * h * (1.0 + jnp.tanh(k0 * (h + 0.044715 * (h * h * h))))
        # Cast back to the model compute dtype (bf16 on v6e/v7x models) so the
        # second, largest-K matmul runs at full MXU rate; accumulate in f32.
        g = g.astype(w_proj_ref.dtype)
        acc_ref[...] += jnp.dot(g, w_proj_ref[lo:hi, :],
                                preferred_element_type=jnp.float32)
    o_ref[...] = (acc_ref[...]
                  + b_proj_ref[...].astype(jnp.float32)).astype(o_ref.dtype)


def mlp_forward(x, w_fc, b_fc, w_proj, b_proj, *, tm=256, max_hidden_chunk=1024):
    """Fused MLP forward.

    x:      (B, T, C)
    w_fc:   (C, 4C)    b_fc:   (4C,)
    w_proj: (4C, C)    b_proj: (C,)

    tm: rows of x per grid step (sweep parameter).  Suggested: v5e multiples
    of 128; v6e 512 (f32) / 1024 (bf16); v7x ~256 (64 MiB VMEM budget).
    max_hidden_chunk: bound on the in-kernel hidden-dim chunk (multiple of 128).
    """
    B, T, C = x.shape
    H = w_fc.shape[1]
    assert w_fc.shape == (C, H)
    assert w_proj.shape == (H, C)
    assert b_fc.shape == (H,)
    assert b_proj.shape == (C,)

    M = B * T
    sub = _sublane_multiple(x.dtype)
    tm = max(sub, min(tm, _round_up(M, sub)))
    tm = _round_up(tm, sub)
    m_pad = _round_up(M, tm)

    x2 = x.reshape(M, C)
    if m_pad != M:
        x2 = jnp.pad(x2, ((0, m_pad - M), (0, 0)))

    th = _pick_hidden_chunk(H, max_hidden_chunk)
    n_chunks = H // th

    b_fc2 = b_fc.reshape(1, H)
    b_proj2 = b_proj.reshape(1, C)

    kernel = functools.partial(_mlp_kernel, hidden_chunk=th, n_chunks=n_chunks)

    def build(single_buffer_weights):
        if single_buffer_weights:
            # Constant index_map => never re-fetched; one VMEM buffer is enough
            # (halves resident-weight VMEM, which is what lets big tm fit on v7x).
            def resident(shape):
                return pl.BlockSpec(shape, lambda i: (0, 0),
                                    pipeline_mode=pl.Buffered(1))
        else:
            def resident(shape):
                return pl.BlockSpec(shape, lambda i: (0, 0))

        grid_spec = pltpu.PrefetchScalarGridSpec(
            num_scalar_prefetch=0,
            grid=(m_pad // tm,),
            in_specs=[
                pl.BlockSpec((tm, C), lambda i: (i, 0)),   # x row tile (pipelined)
                resident((C, H)),                          # w_fc  (VMEM-resident)
                resident((1, H)),                          # b_fc
                resident((H, C)),                          # w_proj (VMEM-resident)
                resident((1, C)),                          # b_proj
            ],
            out_specs=pl.BlockSpec((tm, C), lambda i: (i, 0)),
            scratch_shapes=[pltpu.VMEM((tm, C), jnp.float32)],  # f32 accumulator
        )
        return pl.pallas_call(
            kernel,
            out_shape=jax.ShapeDtypeStruct((m_pad, C), x.dtype),
            grid_spec=grid_spec,
            compiler_params=pltpu.CompilerParams(
                # "parallel" lets v7x's two TensorCores split the row grid.
                dimension_semantics=("parallel",),
                vmem_limit_bytes=_vmem_limit_bytes(),
            ),
        )

    try:
        out = build(True)(x2, w_fc, b_fc2, w_proj, b_proj2)
    except Exception:
        # Fallback for JAX builds where pipeline_mode=pl.Buffered(1) is not
        # supported on the outer pallas_call pipeline (correctness unchanged).
        out = build(False)(x2, w_fc, b_fc2, w_proj, b_proj2)

    return out[:M].reshape(B, T, C)


def reference_mlp(x, w_fc, b_fc, w_proj, b_proj):
    k0 = math.sqrt(2.0 / math.pi)
    xf = x.astype(jnp.float32)
    h = jnp.einsum("btc,ch->bth", xf, w_fc.astype(jnp.float32)) + b_fc.astype(jnp.float32)
    g = 0.5 * h * (1.0 + jnp.tanh(k0 * (h + 0.044715 * h ** 3)))
    return jnp.einsum("bth,hc->btc", g, w_proj.astype(jnp.float32)) + b_proj.astype(jnp.float32)


if __name__ == "__main__":
    key = jax.random.PRNGKey(0)

    # --- Test 1: small GPT-2-style config, f32 (n_embd=32 -> hidden=128). ---
    B, T, C = 2, 8, 32
    H = 4 * C
    kx, k1, k2, k3, k4, key = jax.random.split(key, 6)
    x = jax.random.normal(kx, (B, T, C), dtype=jnp.float32)
    w_fc = jax.random.normal(k1, (C, H), dtype=jnp.float32) * 0.02
    b_fc = jax.random.normal(k2, (H,), dtype=jnp.float32) * 0.02
    w_proj = jax.random.normal(k3, (H, C), dtype=jnp.float32) * 0.02
    b_proj = jax.random.normal(k4, (C,), dtype=jnp.float32) * 0.02

    out = jax.block_until_ready(mlp_forward(x, w_fc, b_fc, w_proj, b_proj))
    ref = reference_mlp(x, w_fc, b_fc, w_proj, b_proj)
    assert out.shape == (B, T, C)
    assert jnp.allclose(out, ref, atol=1e-5, rtol=1e-5), "f32 mismatch vs reference"

    # --- Test 2: exercises M padding, hidden-dim chunking and the bf16 cast path. ---
    B2, T2, C2 = 2, 24, 128          # M = 48 (ragged vs tm), hidden = 512
    H2 = 4 * C2
    kx, k1, k2, k3, k4, key = jax.random.split(key, 6)
    xb = jax.random.normal(kx, (B2, T2, C2), dtype=jnp.float32).astype(jnp.bfloat16)
    w_fcb = (jax.random.normal(k1, (C2, H2), dtype=jnp.float32) * 0.02).astype(jnp.bfloat16)
    b_fcb = (jax.random.normal(k2, (H2,), dtype=jnp.float32) * 0.02).astype(jnp.bfloat16)
    w_projb = (jax.random.normal(k3, (H2, C2), dtype=jnp.float32) * 0.02).astype(jnp.bfloat16)
    b_projb = (jax.random.normal(k4, (C2,), dtype=jnp.float32) * 0.02).astype(jnp.bfloat16)

    out2 = jax.block_until_ready(
        mlp_forward(xb, w_fcb, b_fcb, w_projb, b_projb, tm=256, max_hidden_chunk=128))
    ref2 = reference_mlp(xb, w_fcb, b_fcb, w_projb, b_projb)
    assert out2.shape == (B2, T2, C2)
    assert jnp.allclose(out2.astype(jnp.float32), ref2, atol=3e-2, rtol=3e-2), \
        "bf16 mismatch vs reference"

    print("KERNEL_OK")
</pallas_src>

<mosaic_0001>
module attributes {stable_mosaic.version = 11 : i64} {
  func.func @_mlp_kernel(%arg0: i32, %arg1: memref<16x32xf32, #tpu.memory_space<vmem>>, %arg2: memref<32x128xf32, #tpu.memory_space<vmem>>, %arg3: memref<1x128xf32, #tpu.memory_space<vmem>>, %arg4: memref<128x32xf32, #tpu.memory_space<vmem>>, %arg5: memref<1x32xf32, #tpu.memory_space<vmem>>, %arg6: memref<16x32xf32, #tpu.memory_space<vmem>>, %arg7: memref<16x32xf32, #tpu.memory_space<vmem>>) attributes {dimension_semantics = [#tpu.dimension_semantics<parallel>], iteration_bounds = array<i64: 1>, scalar_prefetch = 0 : i64, scratch_operands = 1 : i64, tpu.core_type = #tpu.core_type<tc>, window_params = [{transform_indices = @transform_0, window_bounds = array<i64: 16, 32>}, {pipeline_mode = #tpu.pipeline_mode<synchronous>, transform_indices = @transform_1, window_bounds = array<i64: 32, 128>}, {pipeline_mode = #tpu.pipeline_mode<synchronous>, transform_indices = @transform_2, window_bounds = array<i64: 1, 128>}, {pipeline_mode = #tpu.pipeline_mode<synchronous>, transform_indices = @transform_3, window_bounds = array<i64: 128, 32>}, {pipeline_mode = #tpu.pipeline_mode<synchronous>, transform_indices = @transform_4, window_bounds = array<i64: 1, 32>}, {transform_indices = @transform_5, window_bounds = array<i64: 16, 32>}]} {
    %cst = arith.constant 0.000000e+00 : f32
    %0 = vector.broadcast %cst : f32 to vector<16x32xf32>
    %c0 = arith.constant 0 : index
    %c0_0 = arith.constant 0 : index
    %1 = vector.load %arg7[%c0, %c0_0] : memref<16x32xf32, #tpu.memory_space<vmem>>, vector<16x32xf32>
    tpu.vector_store %arg7[%c0, %c0_0], %0 {strides = array<i32>} : memref<16x32xf32, #tpu.memory_space<vmem>>, vector<16x32xf32>,
    %c0_1 = arith.constant 0 : index
    %c0_2 = arith.constant 0 : index
    %2 = vector.load %arg1[%c0_1, %c0_2] : memref<16x32xf32, #tpu.memory_space<vmem>>, vector<16x32xf32>
    %c0_3 = arith.constant 0 : index
    %c0_4 = arith.constant 0 : index
    %3 = vector.load %arg2[%c0_3, %c0_4] : memref<32x128xf32, #tpu.memory_space<vmem>>, vector<32x128xf32>
    %cst_5 = arith.constant dense<0.000000e+00> : vector<16x128xf32>
    %4 = tpu.matmul %2, %3, %cst_5 {dimension_numbers = #tpu.dot_dimension_numbers<[1], [0], [0], [1], [0, 0, 1, 1], [], []>} : vector<16x32xf32>, vector<32x128xf32>, vector<16x128xf32> -> vector<16x128xf32>
    %c0_6 = arith.constant 0 : index
    %c0_7 = arith.constant 0 : index
    %5 = vector.load %arg3[%c0_6, %c0_7] : memref<1x128xf32, #tpu.memory_space<vmem>>, vector<1x128xf32>
    %6 = vector.broadcast %5 : vector<1x128xf32> to vector<16x128xf32>
    %7 = arith.addf %4, %6 : vector<16x128xf32>
    %cst_8 = arith.constant 5.000000e-01 : f32
    %8 = vector.broadcast %cst_8 : f32 to vector<16x128xf32>
    %9 = arith.mulf %8, %7 : vector<16x128xf32>
    %10 = arith.mulf %7, %7 : vector<16x128xf32>
    %11 = arith.mulf %10, %7 : vector<16x128xf32>
    %cst_9 = arith.constant 4.471500e-02 : f32
    %12 = vector.broadcast %cst_9 : f32 to vector<16x128xf32>
    %13 = arith.mulf %12, %11 : vector<16x128xf32>
    %14 = arith.addf %7, %13 : vector<16x128xf32>
    %cst_10 = arith.constant 0.797884583 : f32
    %15 = vector.broadcast %cst_10 : f32 to vector<16x128xf32>
    %16 = arith.mulf %15, %14 : vector<16x128xf32>
    %17 = math.tanh %16 : vector<16x128xf32>
    %cst_11 = arith.constant 1.000000e+00 : f32
    %18 = vector.broadcast %cst_11 : f32 to vector<16x128xf32>
    %19 = arith.addf %18, %17 : vector<16x128xf32>
    %20 = arith.mulf %9, %19 : vector<16x128xf32>
    %c0_12 = arith.constant 0 : index
    %c0_13 = arith.constant 0 : index
    %21 = vector.load %arg7[%c0_12, %c0_13] : memref<16x32xf32, #tpu.memory_space<vmem>>, vector<16x32xf32>
    %c0_14 = arith.constant 0 : index
    %c0_15 = arith.constant 0 : index
    %22 = vector.load %arg4[%c0_14, %c0_15] : memref<128x32xf32, #tpu.memory_space<vmem>>, vector<128x32xf32>
    %cst_16 = arith.constant dense<0.000000e+00> : vector<16x32xf32>
    %23 = tpu.matmul %20, %22, %cst_16 {dimension_numbers = #tpu.dot_dimension_numbers<[1], [0], [0], [1], [0, 0, 1, 1], [], []>} : vector<16x128xf32>, vector<128x32xf32>, vector<16x32xf32> -> vector<16x32xf32>
    %24 = arith.addf %21, %23 : vector<16x32xf32>
    %c0_17 = arith.constant 0 : index
    %c0_18 = arith.constant 0 : index
    %25 = vector.load %arg7[%c0_17, %c0_18] : memref<16x32xf32, #tpu.memory_space<vmem>>, vector<16x32xf32>
    tpu.vector_store %arg7[%c0_17, %c0_18], %24 {strides = array<i32>} : memref<16x32xf32, #tpu.memory_space<vmem>>, vector<16x32xf32>,
    %c0_19 = arith.constant 0 : index
    %c0_20 = arith.constant 0 : index
    %26 = vector.load %arg7[%c0_19, %c0_20] : memref<16x32xf32, #tpu.memory_space<vmem>>, vector<16x32xf32>
    %c0_21 = arith.constant 0 : index
    %c0_22 = arith.constant 0 : index
    %27 = vector.load %arg5[%c0_21, %c0_22] : memref<1x32xf32, #tpu.memory_space<vmem>>, vector<1x32xf32>
    %28 = vector.broadcast %27 : vector<1x32xf32> to vector<16x32xf32>
    %29 = arith.addf %26, %28 : vector<16x32xf32>
    %c0_23 = arith.constant 0 : index
    %c0_24 = arith.constant 0 : index
    %30 = vector.load %arg6[%c0_23, %c0_24] : memref<16x32xf32, #tpu.memory_space<vmem>>, vector<16x32xf32>
    tpu.vector_store %arg6[%c0_23, %c0_24], %29 {strides = array<i32>} : memref<16x32xf32, #tpu.memory_space<vmem>>, vector<16x32xf32>,
    return
  }
  func.func @transform_0(%arg0: i32) -> (i32, i32) {
    %c0_i32 = arith.constant 0 : i32
    %c0_i32_0 = arith.constant 0 : i32
    return %arg0, %c0_i32 : i32, i32
  }
  func.func @transform_1(%arg0: i32) -> (i32, i32) {
    %c0_i32 = arith.constant 0 : i32
    %c0_i32_0 = arith.constant 0 : i32
    %c0_i32_1 = arith.constant 0 : i32
    return %c0_i32, %c0_i32_0 : i32, i32
  }
  func.func @transform_2(%arg0: i32) -> (i32, i32) {
    %c0_i32 = arith.constant 0 : i32
    %c0_i32_0 = arith.constant 0 : i32
    %c0_i32_1 = arith.constant 0 : i32
    return %c0_i32, %c0_i32_0 : i32, i32
  }
  func.func @transform_3(%arg0: i32) -> (i32, i32) {
    %c0_i32 = arith.constant 0 : i32
    %c0_i32_0 = arith.constant 0 : i32
    %c0_i32_1 = arith.constant 0 : i32
    return %c0_i32, %c0_i32_0 : i32, i32
  }
  func.func @transform_4(%arg0: i32) -> (i32, i32) {
    %c0_i32 = arith.constant 0 : i32
    %c0_i32_0 = arith.constant 0 : i32
    %c0_i32_1 = arith.constant 0 : i32
    return %c0_i32, %c0_i32_0 : i32, i32
  }
  func.func @transform_5(%arg0: i32) -> (i32, i32) {
    %c0_i32 = arith.constant 0 : i32
    %c0_i32_0 = arith.constant 0 : i32
    return %arg0, %c0_i32 : i32, i32
  }
}

module attributes {stable_mosaic.version = 11 : i64} {
  func.func @_mlp_kernel(%arg0: i32, %arg1: memref<16x32xf32, #tpu.memory_space<vmem>>, %arg2: memref<32x128xf32, #tpu.memory_space<vmem>>, %arg3: memref<1x128xf32, #tpu.memory_space<vmem>>, %arg4: memref<128x32xf32, #tpu.memory_space<vmem>>, %arg5: memref<1x32xf32, #tpu.memory_space<vmem>>, %arg6: memref<16x32xf32, #tpu.memory_space<vmem>>, %arg7: memref<16x32xf32, #tpu.memory_space<vmem>>) attributes {dimension_semantics = [#tpu.dimension_semantics<parallel>], iteration_bounds = array<i64: 1>, scalar_prefetch = 0 : i64, scratch_operands = 1 : i64, tpu.core_type = #tpu.core_type<tc>, window_params = [{transform_indices = @transform_0, window_bounds = array<i64: 16, 32>}, {pipeline_mode = #tpu.pipeline_mode<synchronous>, transform_indices = @transform_1, window_bounds = array<i64: 32, 128>}, {pipeline_mode = #tpu.pipeline_mode<synchronous>, transform_indices = @transform_2, window_bounds = array<i64: 1, 128>}, {pipeline_mode = #tpu.pipeline_mode<synchronous>, transform_indices = @transform_3, window_bounds = array<i64: 128, 32>}, {pipeline_mode = #tpu.pipeline_mode<synchronous>, transform_indices = @transform_4, window_bounds = array<i64: 1, 32>}, {transform_indices = @transform_5, window_bounds = array<i64: 16, 32>}]} {
    %cst = arith.constant 0.000000e+00 : f32
    %0 = vector.broadcast %cst : f32 to vector<16x32xf32>
    %c0 = arith.constant 0 : index
    %c0_0 = arith.constant 0 : index
    %1 = vector.load %arg7[%c0, %c0_0] : memref<16x32xf32, #tpu.memory_space<vmem>>, vector<16x32xf32>
    tpu.vector_store %arg7[%c0, %c0_0], %0 {strides = array<i32>} : memref<16x32xf32, #tpu.memory_space<vmem>>, vector<16x32xf32>,
    %c0_1 = arith.constant 0 : index
    %c0_2 = arith.constant 0 : index
    %2 = vector.load %arg1[%c0_1, %c0_2] : memref<16x32xf32, #tpu.memory_space<vmem>>, vector<16x32xf32>
    %c0_3 = arith.constant 0 : index
    %c0_4 = arith.constant 0 : index
    %3 = vector.load %arg2[%c0_3, %c0_4] : memref<32x128xf32, #tpu.memory_space<vmem>>, vector<32x128xf32>
    %cst_5 = arith.constant dense<0.000000e+00> : vector<16x128xf32>
    %4 = tpu.matmul %2, %3, %cst_5 {dimension_numbers = #tpu.dot_dimension_numbers<[1], [0], [0], [1], [0, 0, 1, 1], [], []>} : vector<16x32xf32>, vector<32x128xf32>, vector<16x128xf32> -> vector<16x128xf32>
    %c0_6 = arith.constant 0 : index
    %c0_7 = arith.constant 0 : index
    %5 = vector.load %arg3[%c0_6, %c0_7] : memref<1x128xf32, #tpu.memory_space<vmem>>, vector<1x128xf32>
    %6 = vector.broadcast %5 : vector<1x128xf32> to vector<16x128xf32>
    %7 = arith.addf %4, %6 : vector<16x128xf32>
    %cst_8 = arith.constant 5.000000e-01 : f32
    %8 = vector.broadcast %cst_8 : f32 to vector<16x128xf32>
    %9 = arith.mulf %8, %7 : vector<16x128xf32>
    %10 = arith.mulf %7, %7 : vector<16x128xf32>
    %11 = arith.mulf %10, %7 : vector<16x128xf32>
    %cst_9 = arith.constant 4.471500e-02 : f32
    %12 = vector.broadcast %cst_9 : f32 to vector<16x128xf32>
    %13 = arith.mulf %12, %11 : vector<16x128xf32>
    %14 = arith.addf %7, %13 : vector<16x128xf32>
    %cst_10 = arith.constant 0.797884583 : f32
    %15 = vector.broadcast %cst_10 : f32 to vector<16x128xf32>
    %16 = arith.mulf %15, %14 : vector<16x128xf32>
    %17 = math.tanh %16 : vector<16x128xf32>
    %cst_11 = arith.constant 1.000000e+00 : f32
    %18 = vector.broadcast %cst_11 : f32 to vector<16x128xf32>
    %19 = arith.addf %18, %17 : vector<16x128xf32>
    %20 = arith.mulf %9, %19 : vector<16x128xf32>
    %c0_12 = arith.constant 0 : index
    %c0_13 = arith.constant 0 : index
    %21 = vector.load %arg7[%c0_12, %c0_13] : memref<16x32xf32, #tpu.memory_space<vmem>>, vector<16x32xf32>
    %c0_14 = arith.constant 0 : index
    %c0_15 = arith.constant 0 : index
    %22 = vector.load %arg4[%c0_14, %c0_15] : memref<128x32xf32, #tpu.memory_space<vmem>>, vector<128x32xf32>
    %cst_16 = arith.constant dense<0.000000e+00> : vector<16x32xf32>
    %23 = tpu.matmul %20, %22, %cst_16 {dimension_numbers = #tpu.dot_dimension_numbers<[1], [0], [0], [1], [0, 0, 1, 1], [], []>} : vector<16x128xf32>, vector<128x32xf32>, vector<16x32xf32> -> vector<16x32xf32>
    %24 = arith.addf %21, %23 : vector<16x32xf32>
    %c0_17 = arith.constant 0 : index
    %c0_18 = arith.constant 0 : index
    %25 = vector.load %arg7[%c0_17, %c0_18] : memref<16x32xf32, #tpu.memory_space<vmem>>, vector<16x32xf32>
    tpu.vector_store %arg7[%c0_17, %c0_18], %24 {strides = array<i32>} : memref<16x32xf32, #tpu.memory_space<vmem>>, vector<16x32xf32>,
    %c0_19 = arith.constant 0 : index
    %c0_20 = arith.constant 0 : index
    %26 = vector.load %arg7[%c0_19, %c0_20] : memref<16x32xf32, #tpu.memory_space<vmem>>, vector<16x32xf32>
    %c0_21 = arith.constant 0 : index
    %c0_22 = arith.constant 0 : index
    %27 = vector.load %arg5[%c0_21, %c0_22] : memref<1x32xf32, #tpu.memory_space<vmem>>, vector<1x32xf32>
    %28 = vector.broadcast %27 : vector<1x32xf32> to vector<16x32xf32>
    %29 = arith.addf %26, %28 : vector<16x32xf32>
    %c0_23 = arith.constant 0 : index
    %c0_24 = arith.constant 0 : index
    %30 = vector.load %arg6[%c0_23, %c0_24] : memref<16x32xf32, #tpu.memory_space<vmem>>, vector<16x32xf32>
    tpu.vector_store %arg6[%c0_23, %c0_24], %29 {strides = array<i32>} : memref<16x32xf32, #tpu.memory_space<vmem>>, vector<16x32xf32>,
    return
  }
  func.func @transform_0(%arg0: i32) -> (i32, i32) {
    %c0_i32 = arith.constant 0 : i32
    %c0_i32_0 = arith.constant 0 : i32
    return %arg0, %c0_i32 : i32, i32
  }
  func.func @transform_1(%arg0: i32) -> (i32, i32) {
    %c0_i32 = arith.constant 0 : i32
    %c0_i32_0 = arith.constant 0 : i32
    %c0_i32_1 = arith.constant 0 : i32
    return %c0_i32, %c0_i32_0 : i32, i32
  }
  func.func @transform_2(%arg0: i32) -> (i32, i32) {
    %c0_i32 = arith.constant 0 : i32
    %c0_i32_0 = arith.constant 0 : i32
    %c0_i32_1 = arith.constant 0 : i32
    return %c0_i32, %c0_i32_0 : i32, i32
  }
  func.func @transform_3(%arg0: i32) -> (i32, i32) {
    %c0_i32 = arith.constant 0 : i32
    %c0_i32_0 = arith.constant 0 : i32
    %c0_i32_1 = arith.constant 0 : i32
    return %c0_i32, %c0_i32_0 : i32, i32
  }
  func.func @transform_4(%arg0: i32) -> (i32, i32) {
    %c0_i32 = arith.constant 0 : i32
    %c0_i32_0 = arith.constant 0 : i32
    %c0_i32_1 = arith.constant 0 : i32
    return %c0_i32, %c0_i32_0 : i32, i32
  }
  func.func @transform_5(%arg0: i32) -> (i32, i32) {
    %c0_i32 = arith.constant 0 : i32
    %c0_i32_0 = arith.constant 0 : i32
    return %arg0, %c0_i32 : i32, i32
  }
}

</mosaic_0001>

<llo_original>
// kernel: tpu_custom_call.1
$region0: #{tpu_custom_call.1}
  #allocation0 [shape = 'u32[]', space=smem, size = 0x4, offset = 0x4, fixed_abs, tag = 'smem constant byte address 0x4 - core index']
  #allocation1 [shape = 'u32[144,128]{1,0:T(1,128)}', space=vmem, size = 0x12000, scoped, tag = 'internal scratch']
  #allocation2 [shape = 'f32[16,32]{1,0:T(8,128)}', space=vmem, size = 0x2000, scoped, tag = 'scratch operand']
  %s0 = inlined_call_operand.hbm [shape: f32[16,32], index: 0, kind: input, shape index: {}]
  %s1 = inlined_call_operand.hbm [shape: f32[32,128], index: 1, kind: input, shape index: {}]
  %s2 = inlined_call_operand.hbm [shape: f32[1,128], index: 2, kind: input, shape index: {}]
  %s3 = inlined_call_operand.hbm [shape: f32[128,32], index: 3, kind: input, shape index: {}]
  %s4 = inlined_call_operand.hbm [shape: f32[1,32], index: 4, kind: input, shape index: {}]
  %s5 = inlined_call_operand.hbm [shape: f32[16,32], index: 5, kind: output, shape index: {}]
  %s6 = sld [smem:[#allocation0]]
  $region50: #{tpu_custom_call.1} parent=0
    _
  %s8 = ssub.s32 1, %s6
  %s9 = scalar_select 0, %s8, %s6
  $region1: #{tpu_custom_call.1} parent=0
    #allocation3 [shape = 'u8[8192]{0}', space=vmem, size = 0x2000, scoped, tag = 'input window, operand 0, single buffered']
    #allocation4 [shape = 's32[1]{0}', space=sflag, size = 0x4, scoped, tag = 'scoped memory for tpu_custom_call.1']
    #allocation5 [shape = 's32[1]{0}', space=sflag, size = 0x4, scoped, tag = 'scoped memory for tpu_custom_call.1']
    #allocation6 [shape = 'u8[16384]{0}', space=vmem, size = 0x4000, scoped, tag = 'input window, operand 1, single buffered']
    #allocation7 [shape = 's32[1]{0}', space=sflag, size = 0x4, scoped, tag = 'scoped memory for tpu_custom_call.1']
    #allocation8 [shape = 'u8[512]{0}', space=vmem, size = 0x400, scoped, tag = 'input window, operand 2, single buffered']
    #allocation9 [shape = 'u8[65536]{0}', space=vmem, size = 0x10000, scoped, tag = 'input window, operand 3, single buffered']
    #allocation10 [shape = 's32[1]{0}', space=sflag, size = 0x4, scoped, tag = 'scoped memory for tpu_custom_call.1']
    #allocation11 [shape = 'u8[512]{0}', space=vmem, size = 0x400, scoped, tag = 'input window, operand 4, single buffered']
    #allocation12 [shape = 'u8[8192]{0}', space=vmem, size = 0x2000, scoped, tag = 'output window, operand 0, single buffered']
    %10 = vsyncpa [#allocation4], 0
    %11 = vsyncpa [#allocation7], 0
    %12 = vsyncpa [#allocation10], 0
    %13 = vsyncpa [#allocation5], 0
    // Predicated region
    $region2: #{tpu_custom_call.1} parent=1 // pred_check
      _
    $region3: #{tpu_custom_call.1} parent=1 // pred_check_branch
      %15 = sbr.rel (0) target = $region5
    $region4: #{tpu_custom_call.1} parent=1 // pred_region
      %s17 = ssub.s32 256, 256
      %18 = vsyncadd [#allocation4], %s17
      %s19 = sshll.u32 [#allocation3], 4
      %s20 = int_to_ptr.vmem [resolvable:$true] %s19
      %25 = dma.hbm_to_vmem [thread:$0]  %s0, 256, %s20, [#allocation4], 128, 128, 8
    $region5: #{tpu_custom_call.1} parent=1 // pred_fallthru
      _
    // Predicated region
    $region6: #{tpu_custom_call.1} parent=1 // pred_check
      _
    $region7: #{tpu_custom_call.1} parent=1 // pred_check_branch
      %27 = sbr.rel (0) target = $region9
    $region8: #{tpu_custom_call.1} parent=1 // pred_region
      %s29 = ssub.s32 512, 512
      %30 = vsyncadd [#allocation7], %s29
      %s31 = sshll.u32 [#allocation6], 4
      %s32 = int_to_ptr.vmem [resolvable:$true] %s31
      %37 = dma.hbm_to_vmem [thread:$0]  %s1, 512, %s32, [#allocation7], 128, 128, 8
    $region9: #{tpu_custom_call.1} parent=1 // pred_fallthru
      _
    // Predicated region
    $region10: #{tpu_custom_call.1} parent=1 // pred_check
      _
    $region11: #{tpu_custom_call.1} parent=1 // pred_check_branch
      %39 = sbr.rel (0) target = $region13
    $region12: #{tpu_custom_call.1} parent=1 // pred_region
      %s41 = ssub.s32 16, 16
      %42 = vsyncadd [#allocation7], %s41
      %s44 = sshll.u32 [#allocation8], 4
      %s45 = int_to_ptr.vmem [resolvable:$true] %s44
      %47 = dma.hbm_to_vmem [thread:$0]  %s2, 16, %s45, [#allocation7]
    $region13: #{tpu_custom_call.1} parent=1 // pred_fallthru
      _
    // Predicated region
    $region14: #{tpu_custom_call.1} parent=1 // pred_check
      _
    $region15: #{tpu_custom_call.1} parent=1 // pred_check_branch
      %49 = sbr.rel (0) target = $region17
    $region16: #{tpu_custom_call.1} parent=1 // pred_region
      %s51 = ssub.s32 2048, 2048
      %52 = vsyncadd [#allocation10], %s51
      %s53 = sshll.u32 [#allocation9], 4
      %s54 = int_to_ptr.vmem [resolvable:$true] %s53
      %59 = dma.hbm_to_vmem [thread:$0]  %s3, 2048, %s54, [#allocation10], 128, 128, 8
    $region17: #{tpu_custom_call.1} parent=1 // pred_fallthru
      _
    // Predicated region
    $region18: #{tpu_custom_call.1} parent=1 // pred_check
      _
    $region19: #{tpu_custom_call.1} parent=1 // pred_check_branch
      %61 = sbr.rel (0) target = $region21
    $region20: #{tpu_custom_call.1} parent=1 // pred_region
      %s63 = ssub.s32 16, 16
      %64 = vsyncadd [#allocation10], %s63
      %s66 = sshll.u32 [#allocation11], 4
      %s67 = int_to_ptr.vmem [resolvable:$true] %s66
      %69 = dma.hbm_to_vmem [thread:$0]  %s4, 16, %s67, [#allocation10]
    $region21: #{tpu_custom_call.1} parent=1 // pred_fallthru
      _
    // Predicated region
    $region22: #{tpu_custom_call.1} parent=1 // pred_check
      _
    $region23: #{tpu_custom_call.1} parent=1 // pred_check_branch
      %71 = sbr.rel (0) target = $region25
    $region24: #{tpu_custom_call.1} parent=1 // pred_region
      %72 = dma.done [#allocation4], 256
    $region25: #{tpu_custom_call.1} parent=1 // pred_fallthru
      _
    // Predicated region
    $region26: #{tpu_custom_call.1} parent=1 // pred_check
      _
    $region27: #{tpu_custom_call.1} parent=1 // pred_check_branch
      %74 = sbr.rel (0) target = $region29
    $region28: #{tpu_custom_call.1} parent=1 // pred_region
      %75 = dma.done [#allocation7], 512
    $region29: #{tpu_custom_call.1} parent=1 // pred_fallthru
      _
    // Predicated region
    $region30: #{tpu_custom_call.1} parent=1 // pred_check
      _
    $region31: #{tpu_custom_call.1} parent=1 // pred_check_branch
      %77 = sbr.rel (0) target = $region33
    $region32: #{tpu_custom_call.1} parent=1 // pred_region
      %78 = dma.done [#allocation7], 16
    $region33: #{tpu_custom_call.1} parent=1 // pred_fallthru
      _
    // Predicated region
    $region34: #{tpu_custom_call.1} parent=1 // pred_check
      _
    $region35: #{tpu_custom_call.1} parent=1 // pred_check_branch
      %80 = sbr.rel (0) target = $region37
    $region36: #{tpu_custom_call.1} parent=1 // pred_region
      %81 = dma.done [#allocation10], 2048
    $region37: #{tpu_custom_call.1} parent=1 // pred_fallthru
      _
    // Predicated region
    $region38: #{tpu_custom_call.1} parent=1 // pred_check
      _
    $region39: #{tpu_custom_call.1} parent=1 // pred_check_branch
      %83 = sbr.rel (0) target = $region41
    $region40: #{tpu_custom_call.1} parent=1 // pred_region
      %84 = dma.done [#allocation10], 16
    $region41: #{tpu_custom_call.1} parent=1 // pred_fallthru
      _
    %vm85 = vcmask 261120
    %86 = vst.msk [vmem:[#allocation2] sm:$0xff] %vm85, 0.0
    %87 = vst.msk [vmem:[#allocation2 + $0x8] sm:$0xff] %vm85, 0.0
    %v88 = vld [vmem:[#allocation3] sm:$0xff]
    %v89 = vld [vmem:[#allocation3 + $0x8] sm:$0xff]
    %v90 = vld [vmem:[#allocation6] sm:$0xff]
    %v91 = vld [vmem:[#allocation6 + $0x8] sm:$0xff]
    %v92 = vld [vmem:[#allocation6 + $0x10] sm:$0xff]
    %v93 = vld [vmem:[#allocation6 + $0x18] sm:$0xff]
    %v94 = vld [vmem:[#allocation8] sm:$0x1]
    %v96 = vlaneseq
    %v97 = vshrl.u32 %v96, 7
    %v98 = vsub.s32 0, %v97
    %v99 = vrot.slane %v94, %v98
    %v102 = vsel %vm85, %v88, 0
    %v105 = vsel %vm85, %v89, 0
    %107 = vmatprep.subr.mxu0 0.0
    %108 = vmatpush1.msra.mxu0 %v90
    %109 = vmatprep.subr.mxu0 0.0
    %110 = vmatpush1.msra.mxu0 %v91
    %111 = vmatprep.subr.mxu0 0.0
    %112 = vmatpush1.msra.mxu0 %v92
    %113 = vmatprep.subr.mxu0 0.0
    %114 = vmatpush1.msra.mxu0 %v93
    %115 = vmatprep.subr.mxu0 0.0
    %116 = vmatpush1.msra.mxu0 0.0
    %117 = vmatprep.subr.mxu0 0.0
    %118 = vmatpush1.msra.mxu0 0.0
    %119 = vmatprep.subr.mxu0 0.0
    %120 = vmatpush1.msra.mxu0 0.0
    %121 = vmatprep.subr.mxu0 0.0
    %122 = vmatpush1.msra.mxu0 0.0
    %123 = vmatprep.subr.mxu0 0.0
    %124 = vmatpush1.msra.mxu0 0.0
    %125 = vmatprep.subr.mxu0 0.0
    %126 = vmatpush1.msra.mxu0 0.0
    %127 = vmatprep.subr.mxu0 0.0
    %128 = vmatpush1.msra.mxu0 0.0
    %129 = vmatprep.subr.mxu0 0.0
    %130 = vmatpush1.msra.mxu0 0.0
    %131 = vmatprep.subr.mxu0 0.0
    %132 = vmatpush1.msra.mxu0 0.0
    %133 = vmatprep.subr.mxu0 0.0
    %134 = vmatpush1.msra.mxu0 0.0
    %135 = vmatprep.subr.mxu0 0.0
    %136 = vmatpush1.msra.mxu0 0.0
    %137 = vmatprep.subr.mxu0 0.0
    %138 = vmatpush1.msra.mxu0 0.0
    %139 = vmatprep.subr.mxu0 0.0
    %140 = vmatpush1.msra.mxu0 0.0
    %141 = vmatprep.subr.mxu0 0.0
    %142 = vmatpush1.msra.mxu0 0.0
    %143 = vmatprep.subr.mxu0 0.0
    %144 = vmatpush1.msra.mxu0 0.0
    %145 = vmatprep.subr.mxu0 0.0
    %146 = vmatpush1.msra.mxu0 0.0
    %147 = vmatprep.subr.mxu0 0.0
    %148 = vmatpush1.msra.mxu0 0.0
    %149 = vmatprep.subr.mxu0 0.0
    %150 = vmatpush1.msra.mxu0 0.0
    %151 = vmatprep.subr.mxu0 0.0
    %152 = vmatpush1.msra.mxu0 0.0
    %153 = vmatprep.subr.mxu0 0.0
    %154 = vmatpush1.msra.mxu0 0.0
    %155 = vmatprep.subr.mxu0 0.0
    %156 = vmatpush1.msra.mxu0 0.0
    %157 = vmatprep.subr.mxu0 0.0
    %158 = vmatpush1.msra.mxu0 0.0
    %159 = vmatprep.subr.mxu0 0.0
    %160 = vmatpush1.msra.mxu0 0.0
    %161 = vmatprep.subr.mxu0 0.0
    %162 = vmatpush1.msra.mxu0 0.0
    %163 = vmatprep.subr.mxu0 0.0
    %164 = vmatpush1.msra.mxu0 0.0
    %165 = vmatprep.subr.mxu0 0.0
    %166 = vmatpush1.msra.mxu0 0.0
    %167 = vmatprep.subr.mxu0 0.0
    %168 = vmatpush1.msra.mxu0 0.0
    %169 = vmatprep.subr.mxu0 0.0
    %170 = vmatpush1.msra.mxu0 0.0
    %171 = vmatprep.mubr.f32.mxu0 0.0
    %172 = vmatmul.mubr.f32.gmra.mrb[0].mxu0 %v102
    %v173 = vpop.f32.mrb[0].mxu0
    %v174 = vadd.f32 %v99, %v173
    %v175 = vpop.f32.mrb[0].mxu0
    %176 = vmatprep.mubr.f32.mxu0 0.0
    %177 = vmatmul.mubr.f32.gmra.mrb[0].mxu0 %v105
    %v178 = vpop.f32.mrb[0].mxu0
    %v179 = vadd.f32 %v99, %v178
    %v180 = vpop.f32.mrb[0].mxu0
    %181 = vdwg.mxu0
    %v182 = vmul.f32 %v174, 0.5
    %v183 = vmul.f32 %v179, 0.5
    %v184 = vmul.f32 %v174, %v174
    %v185 = vmul.f32 %v179, %v179
    %v186 = vmul.f32 %v184, %v174
    %v187 = vmul.f32 %v185, %v179
    %v188 = vmul.f32 %v186, 0.044715
    %v189 = vmul.f32 %v187, 0.044715
    %v190 = vadd.f32 %v174, %v188
    %v191 = vadd.f32 %v179, %v189
    %v192 = vmul.f32 %v190, 0.7978846
    %v193 = vmul.f32 %v191, 0.7978846
    %v194 = vtanh.pop %v192
    %v195 = vtanh.pop %v193
    %v196 = vadd.f32 %v194, 1.0
    %v197 = vadd.f32 %v195, 1.0
    %v198 = vmul.f32 %v182, %v196
    %v199 = vmul.f32 %v183, %v197
    %v200 = vld [vmem:[#allocation2] sm:$0xff]
    %v201 = vld [vmem:[#allocation2 + $0x8] sm:$0xff]
    %v202 = vld [vmem:[#allocation9] sm:$0xff]
    %v203 = vld [vmem:[#allocation9 + $0x8] sm:$0xff]
    %v204 = vld [vmem:[#allocation9 + $0x10] sm:$0xff]
    %v205 = vld [vmem:[#allocation9 + $0x18] sm:$0xff]
    %v206 = vld [vmem:[#allocation9 + $0x20] sm:$0xff]
    %v207 = vld [vmem:[#allocation9 + $0x28] sm:$0xff]
    %v208 = vld [vmem:[#allocation9 + $0x30] sm:$0xff]
    %v209 = vld [vmem:[#allocation9 + $0x38] sm:$0xff]
    %v210 = vld [vmem:[#allocation9 + $0x40] sm:$0xff]
    %v211 = vld [vmem:[#allocation9 + $0x48] sm:$0xff]
    %v212 = vld [vmem:[#allocation9 + $0x50] sm:$0xff]
    %v213 = vld [vmem:[#allocation9 + $0x58] sm:$0xff]
    %v214 = vld [vmem:[#allocation9 + $0x60] sm:$0xff]
    %v215 = vld [vmem:[#allocation9 + $0x68] sm:$0xff]
    %v216 = vld [vmem:[#allocation9 + $0x70] sm:$0xff]
    %v217 = vld [vmem:[#allocation9 + $0x78] sm:$0xff]
    %218 = vmatprep.subr.mxu0 0.0
    %219 = vmatpush1.msra.mxu0 %v202
    %220 = vmatprep.subr.mxu0 0.0
    %221 = vmatpush1.msra.mxu0 %v203
    %222 = vmatprep.subr.mxu0 0.0
    %223 = vmatpush1.msra.mxu0 %v204
    %224 = vmatprep.subr.mxu0 0.0
    %225 = vmatpush1.msra.mxu0 %v205
    %226 = vmatprep.subr.mxu0 0.0
    %227 = vmatpush1.msra.mxu0 %v206
    %228 = vmatprep.subr.mxu0 0.0
    %229 = vmatpush1.msra.mxu0 %v207
    %230 = vmatprep.subr.mxu0 0.0
    %231 = vmatpush1.msra.mxu0 %v208
    %232 = vmatprep.subr.mxu0 0.0
    %233 = vmatpush1.msra.mxu0 %v209
    %234 = vmatprep.subr.mxu0 0.0
    %235 = vmatpush1.msra.mxu0 %v210
    %236 = vmatprep.subr.mxu0 0.0
    %237 = vmatpush1.msra.mxu0 %v211
    %238 = vmatprep.subr.mxu0 0.0
    %239 = vmatpush1.msra.mxu0 %v212
    %240 = vmatprep.subr.mxu0 0.0
    %241 = vmatpush1.msra.mxu0 %v213
    %242 = vmatprep.subr.mxu0 0.0
    %243 = vmatpush1.msra.mxu0 %v214
    %244 = vmatprep.subr.mxu0 0.0
    %245 = vmatpush1.msra.mxu0 %v215
    %246 = vmatprep.subr.mxu0 0.0
    %247 = vmatpush1.msra.mxu0 %v216
    %248 = vmatprep.subr.mxu0 0.0
    %249 = vmatpush1.msra.mxu0 %v217
    %250 = vmatprep.subr.mxu0 0.0
    %251 = vmatpush1.msra.mxu0 0.0
    %252 = vmatprep.subr.mxu0 0.0
    %253 = vmatpush1.msra.mxu0 0.0
    %254 = vmatprep.subr.mxu0 0.0
    %255 = vmatpush1.msra.mxu0 0.0
    %256 = vmatprep.subr.mxu0 0.0
    %257 = vmatpush1.msra.mxu0 0.0
    %258 = vmatprep.subr.mxu0 0.0
    %259 = vmatpush1.msra.mxu0 0.0
    %260 = vmatprep.subr.mxu0 0.0
    %261 = vmatpush1.msra.mxu0 0.0
    %262 = vmatprep.subr.mxu0 0.0
    %263 = vmatpush1.msra.mxu0 0.0
    %264 = vmatprep.subr.mxu0 0.0
    %265 = vmatpush1.msra.mxu0 0.0
    %266 = vmatprep.subr.mxu0 0.0
    %267 = vmatpush1.msra.mxu0 0.0
    %268 = vmatprep.subr.mxu0 0.0
    %269 = vmatpush1.msra.mxu0 0.0
    %270 = vmatprep.subr.mxu0 0.0
    %271 = vmatpush1.msra.mxu0 0.0
    %272 = vmatprep.subr.mxu0 0.0
    %273 = vmatpush1.msra.mxu0 0.0
    %274 = vmatprep.subr.mxu0 0.0
    %275 = vmatpush1.msra.mxu0 0.0
    %276 = vmatprep.subr.mxu0 0.0
    %277 = vmatpush1.msra.mxu0 0.0
    %278 = vmatprep.subr.mxu0 0.0
    %279 = vmatpush1.msra.mxu0 0.0
    %280 = vmatprep.subr.mxu0 0.0
    %281 = vmatpush1.msra.mxu0 0.0
    %282 = vmatprep.mubr.f32.mxu0 0.0
    %283 = vmatmul.mubr.f32.gmra.mrb[0].mxu0 %v198
    %v284 = vpop.f32.mrb[0].mxu0
    %v285 = vadd.f32 0.0, %v284
    %v286 = vpop.f32.mrb[0].mxu0
    %287 = vmatprep.mubr.f32.mxu0 0.0
    %288 = vmatmul.mubr.f32.gmra.mrb[0].mxu0 %v199
    %v289 = vpop.f32.mrb[0].mxu0
    %v290 = vadd.f32 0.0, %v289
    %v291 = vpop.f32.mrb[0].mxu0
    %292 = vdwg.mxu0
    %v293 = vadd.f32 %v200, %v285
    %v294 = vadd.f32 %v201, %v290
    %295 = vst.msk [vmem:[#allocation2] sm:$0xff] %vm85, %v293
    %296 = vst.msk [vmem:[#allocation2 + $0x8] sm:$0xff] %vm85, %v294
    %v297 = vld [vmem:[#allocation2] sm:$0xff]
    %v298 = vld [vmem:[#allocation2 + $0x8] sm:$0xff]
    %v299 = vld [vmem:[#allocation11] sm:$0x1]
    %v301 = vlaneseq
    %v302 = vshrl.u32 %v301, 7
    %v303 = vsub.s32 0, %v302
    %v304 = vrot.slane %v299, %v303
    %v306 = vadd.f32 %v297, %v304
    %v307 = vadd.f32 %v298, %v304
    %308 = vst.msk [vmem:[#allocation12] sm:$0xff] %vm85, %v306
    %309 = vst.msk [vmem:[#allocation12 + $0x8] sm:$0xff] %vm85, %v307
    // Predicated region
    $region42: #{tpu_custom_call.1} parent=1 // pred_check
      _
    $region43: #{tpu_custom_call.1} parent=1 // pred_check_branch
      %311 = sbr.rel (0) target = $region45
    $region44: #{tpu_custom_call.1} parent=1 // pred_region
      %s313 = ssub.s32 256, 256
      %314 = vsyncadd [#allocation5], %s313
      %s315 = sshll.u32 [#allocation12], 4
      %s316 = int_to_ptr.vmem [resolvable:$true] %s315
      %321 = dma.vmem_to_hbm [thread:$0]  %s316, 256, %s5, [#allocation5], 128, 128, 8
    $region45: #{tpu_custom_call.1} parent=1 // pred_fallthru
      _
    // Predicated region
    $region46: #{tpu_custom_call.1} parent=1 // pred_check
      _
    $region47: #{tpu_custom_call.1} parent=1 // pred_check_branch
      %323 = sbr.rel (0) target = $region49
    $region48: #{tpu_custom_call.1} parent=1 // pred_region
      %324 = dma.done [#allocation5], 256
    $region49: #{tpu_custom_call.1} parent=1 // pred_fallthru
      _
    %325 = vsyncpa [#allocation4], 1
    %326 = vsyncpa [#allocation7], 1
    %327 = vsyncpa [#allocation10], 1
    %328 = vsyncpa [#allocation5], 1

// kernel: tpu_custom_call.1
$region0: #{tpu_custom_call.1}
  #allocation0 [shape = 'u32[]', space=smem, size = 0x4, offset = 0x4, fixed_abs, tag = 'smem constant byte address 0x4 - core index']
  #allocation1 [shape = 'u32[144,128]{1,0:T(1,128)}', space=vmem, size = 0x12000, scoped, tag = 'internal scratch']
  #allocation2 [shape = 'f32[16,32]{1,0:T(8,128)}', space=vmem, size = 0x2000, scoped, tag = 'scratch operand']
  %s0 = inlined_call_operand.hbm [shape: f32[16,32], index: 0, kind: input, shape index: {}]
  %s1 = inlined_call_operand.hbm [shape: f32[32,128], index: 1, kind: input, shape index: {}]
  %s2 = inlined_call_operand.hbm [shape: f32[1,128], index: 2, kind: input, shape index: {}]
  %s3 = inlined_call_operand.hbm [shape: f32[128,32], index: 3, kind: input, shape index: {}]
  %s4 = inlined_call_operand.hbm [shape: f32[1,32], index: 4, kind: input, shape index: {}]
  %s5 = inlined_call_operand.hbm [shape: f32[16,32], index: 5, kind: output, shape index: {}]
  %s6 = sld [smem:[#allocation0]]
  $region50: #{tpu_custom_call.1} parent=0
    _
  %s8 = ssub.s32 1, %s6
  %s9 = scalar_select 0, %s8, %s6
  $region1: #{tpu_custom_call.1} parent=0
    #allocation3 [shape = 'u8[8192]{0}', space=vmem, size = 0x2000, scoped, tag = 'input window, operand 0, single buffered']
    #allocation4 [shape = 's32[1]{0}', space=sflag, size = 0x4, scoped, tag = 'scoped memory for tpu_custom_call.1']
    #allocation5 [shape = 's32[1]{0}', space=sflag, size = 0x4, scoped, tag = 'scoped memory for tpu_custom_call.1']
    #allocation6 [shape = 'u8[16384]{0}', space=vmem, size = 0x4000, scoped, tag = 'input window, operand 1, single buffered']
    #allocation7 [shape = 's32[1]{0}', space=sflag, size = 0x4, scoped, tag = 'scoped memory for tpu_custom_call.1']
    #allocation8 [shape = 'u8[512]{0}', space=vmem, size = 0x400, scoped, tag = 'input window, operand 2, single buffered']
    #allocation9 [shape = 'u8[65536]{0}', space=vmem, size = 0x10000, scoped, tag = 'input window, operand 3, single buffered']
    #allocation10 [shape = 's32[1]{0}', space=sflag, size = 0x4, scoped, tag = 'scoped memory for tpu_custom_call.1']
    #allocation11 [shape = 'u8[512]{0}', space=vmem, size = 0x400, scoped, tag = 'input window, operand 4, single buffered']
    #allocation12 [shape = 'u8[8192]{0}', space=vmem, size = 0x2000, scoped, tag = 'output window, operand 0, single buffered']
    %10 = vsyncpa [#allocation4], 0
    %11 = vsyncpa [#allocation7], 0
    %12 = vsyncpa [#allocation10], 0
    %13 = vsyncpa [#allocation5], 0
    // Predicated region
    $region2: #{tpu_custom_call.1} parent=1 // pred_check
      _
    $region3: #{tpu_custom_call.1} parent=1 // pred_check_branch
      %15 = sbr.rel (0) target = $region5
    $region4: #{tpu_custom_call.1} parent=1 // pred_region
      %s17 = ssub.s32 256, 256
      %18 = vsyncadd [#allocation4], %s17
      %s19 = sshll.u32 [#allocation3], 4
      %s20 = int_to_ptr.vmem [resolvable:$true] %s19
      %25 = dma.hbm_to_vmem [thread:$0]  %s0, 256, %s20, [#allocation4], 128, 128, 8
    $region5: #{tpu_custom_call.1} parent=1 // pred_fallthru
      _
    // Predicated region
    $region6: #{tpu_custom_call.1} parent=1 // pred_check
      _
    $region7: #{tpu_custom_call.1} parent=1 // pred_check_branch
      %27 = sbr.rel (0) target = $region9
    $region8: #{tpu_custom_call.1} parent=1 // pred_region
      %s29 = ssub.s32 512, 512
      %30 = vsyncadd [#allocation7], %s29
      %s31 = sshll.u32 [#allocation6], 4
      %s32 = int_to_ptr.vmem [resolvable:$true] %s31
      %37 = dma.hbm_to_vmem [thread:$0]  %s1, 512, %s32, [#allocation7], 128, 128, 8
    $region9: #{tpu_custom_call.1} parent=1 // pred_fallthru
      _
    // Predicated region
    $region10: #{tpu_custom_call.1} parent=1 // pred_check
      _
    $region11: #{tpu_custom_call.1} parent=1 // pred_check_branch
      %39 = sbr.rel (0) target = $region13
    $region12: #{tpu_custom_call.1} parent=1 // pred_region
      %s41 = ssub.s32 16, 16
      %42 = vsyncadd [#allocation7], %s41
      %s44 = sshll.u32 [#allocation8], 4
      %s45 = int_to_ptr.vmem [resolvable:$true] %s44
      %47 = dma.hbm_to_vmem [thread:$0]  %s2, 16, %s45, [#allocation7]
    $region13: #{tpu_custom_call.1} parent=1 // pred_fallthru
      _
    // Predicated region
    $region14: #{tpu_custom_call.1} parent=1 // pred_check
      _
    $region15: #{tpu_custom_call.1} parent=1 // pred_check_branch
      %49 = sbr.rel (0) target = $region17
    $region16: #{tpu_custom_call.1} parent=1 // pred_region
      %s51 = ssub.s32 2048, 2048
      %52 = vsyncadd [#allocation10], %s51
      %s53 = sshll.u32 [#allocation9], 4
      %s54 = int_to_ptr.vmem [resolvable:$true] %s53
      %59 = dma.hbm_to_vmem [thread:$0]  %s3, 2048, %s54, [#allocation10], 128, 128, 8
    $region17: #{tpu_custom_call.1} parent=1 // pred_fallthru
      _
    // Predicated region
    $region18: #{tpu_custom_call.1} parent=1 // pred_check
      _
    $region19: #{tpu_custom_call.1} parent=1 // pred_check_branch
      %61 = sbr.rel (0) target = $region21
    $region20: #{tpu_custom_call.1} parent=1 // pred_region
      %s63 = ssub.s32 16, 16
      %64 = vsyncadd [#allocation10], %s63
      %s66 = sshll.u32 [#allocation11], 4
      %s67 = int_to_ptr.vmem [resolvable:$true] %s66
      %69 = dma.hbm_to_vmem [thread:$0]  %s4, 16, %s67, [#allocation10]
    $region21: #{tpu_custom_call.1} parent=1 // pred_fallthru
      _
    // Predicated region
    $region22: #{tpu_custom_call.1} parent=1 // pred_check
      _
    $region23: #{tpu_custom_call.1} parent=1 // pred_check_branch
      %71 = sbr.rel (0) target = $region25
    $region24: #{tpu_custom_call.1} parent=1 // pred_region
      %72 = dma.done [#allocation4], 256
    $region25: #{tpu_custom_call.1} parent=1 // pred_fallthru
      _
    // Predicated region
    $region26: #{tpu_custom_call.1} parent=1 // pred_check
      _
    $region27: #{tpu_custom_call.1} parent=1 // pred_check_branch
      %74 = sbr.rel (0) target = $region29
    $region28: #{tpu_custom_call.1} parent=1 // pred_region
      %75 = dma.done [#allocation7], 512
    $region29: #{tpu_custom_call.1} parent=1 // pred_fallthru
      _
    // Predicated region
    $region30: #{tpu_custom_call.1} parent=1 // pred_check
      _
    $region31: #{tpu_custom_call.1} parent=1 // pred_check_branch
      %77 = sbr.rel (0) target = $region33
    $region32: #{tpu_custom_call.1} parent=1 // pred_region
      %78 = dma.done [#allocation7], 16
    $region33: #{tpu_custom_call.1} parent=1 // pred_fallthru
      _
    // Predicated region
    $region34: #{tpu_custom_call.1} parent=1 // pred_check
      _
    $region35: #{tpu_custom_call.1} parent=1 // pred_check_branch
      %80 = sbr.rel (0) target = $region37
    $region36: #{tpu_custom_call.1} parent=1 // pred_region
      %81 = dma.done [#allocation10], 2048
    $region37: #{tpu_custom_call.1} parent=1 // pred_fallthru
      _
    // Predicated region
    $region38: #{tpu_custom_call.1} parent=1 // pred_check
      _
    $region39: #{tpu_custom_call.1} parent=1 // pred_check_branch
      %83 = sbr.rel (0) target = $region41
    $region40: #{tpu_custom_call.1} parent=1 // pred_region
      %84 = dma.done [#allocation10], 16
    $region41: #{tpu_custom_call.1} parent=1 // pred_fallthru
      _
    %vm85 = vcmask 261120
    %86 = vst.msk [vmem:[#allocation2] sm:$0xff] %vm85, 0.0
    %87 = vst.msk [vmem:[#allocation2 + $0x8] sm:$0xff] %vm85, 0.0
    %v88 = vld [vmem:[#allocation3] sm:$0xff]
    %v89 = vld [vmem:[#allocation3 + $0x8] sm:$0xff]
    %v90 = vld [vmem:[#allocation6] sm:$0xff]
    %v91 = vld [vmem:[#allocation6 + $0x8] sm:$0xff]
    %v92 = vld [vmem:[#allocation6 + $0x10] sm:$0xff]
    %v93 = vld [vmem:[#allocation6 + $0x18] sm:$0xff]
    %v94 = vld [vmem:[#allocation8] sm:$0x1]
    %v96 = vlaneseq
    %v97 = vshrl.u32 %v96, 7
    %v98 = vsub.s32 0, %v97
    %v99 = vrot.slane %v94, %v98
    %v102 = vsel %vm85, %v88, 0
    %v105 = vsel %vm85, %v89, 0
    %107 = vmatprep.subr.mxu0 0.0
    %108 = vmatpush1.msra.mxu0 %v90
    %109 = vmatprep.subr.mxu0 0.0
    %110 = vmatpush1.msra.mxu0 %v91
    %111 = vmatprep.subr.mxu0 0.0
    %112 = vmatpush1.msra.mxu0 %v92
    %113 = vmatprep.subr.mxu0 0.0
    %114 = vmatpush1.msra.mxu0 %v93
    %115 = vmatprep.subr.mxu0 0.0
    %116 = vmatpush1.msra.mxu0 0.0
    %117 = vmatprep.subr.mxu0 0.0
    %118 = vmatpush1.msra.mxu0 0.0
    %119 = vmatprep.subr.mxu0 0.0
    %120 = vmatpush1.msra.mxu0 0.0
    %121 = vmatprep.subr.mxu0 0.0
    %122 = vmatpush1.msra.mxu0 0.0
    %123 = vmatprep.subr.mxu0 0.0
    %124 = vmatpush1.msra.mxu0 0.0
    %125 = vmatprep.subr.mxu0 0.0
    %126 = vmatpush1.msra.mxu0 0.0
    %127 = vmatprep.subr.mxu0 0.0
    %128 = vmatpush1.msra.mxu0 0.0
    %129 = vmatprep.subr.mxu0 0.0
    %130 = vmatpush1.msra.mxu0 0.0
    %131 = vmatprep.subr.mxu0 0.0
    %132 = vmatpush1.msra.mxu0 0.0
    %133 = vmatprep.subr.mxu0 0.0
    %134 = vmatpush1.msra.mxu0 0.0
    %135 = vmatprep.subr.mxu0 0.0
    %136 = vmatpush1.msra.mxu0 0.0
    %137 = vmatprep.subr.mxu0 0.0
    %138 = vmatpush1.msra.mxu0 0.0
    %139 = vmatprep.subr.mxu0 0.0
    %140 = vmatpush1.msra.mxu0 0.0
    %141 = vmatprep.subr.mxu0 0.0
    %142 = vmatpush1.msra.mxu0 0.0
    %143 = vmatprep.subr.mxu0 0.0
    %144 = vmatpush1.msra.mxu0 0.0
    %145 = vmatprep.subr.mxu0 0.0
    %146 = vmatpush1.msra.mxu0 0.0
    %147 = vmatprep.subr.mxu0 0.0
    %148 = vmatpush1.msra.mxu0 0.0
    %149 = vmatprep.subr.mxu0 0.0
    %150 = vmatpush1.msra.mxu0 0.0
    %151 = vmatprep.subr.mxu0 0.0
    %152 = vmatpush1.msra.mxu0 0.0
    %153 = vmatprep.subr.mxu0 0.0
    %154 = vmatpush1.msra.mxu0 0.0
    %155 = vmatprep.subr.mxu0 0.0
    %156 = vmatpush1.msra.mxu0 0.0
    %157 = vmatprep.subr.mxu0 0.0
    %158 = vmatpush1.msra.mxu0 0.0
    %159 = vmatprep.subr.mxu0 0.0
    %160 = vmatpush1.msra.mxu0 0.0
    %161 = vmatprep.subr.mxu0 0.0
    %162 = vmatpush1.msra.mxu0 0.0
    %163 = vmatprep.subr.mxu0 0.0
    %164 = vmatpush1.msra.mxu0 0.0
    %165 = vmatprep.subr.mxu0 0.0
    %166 = vmatpush1.msra.mxu0 0.0
    %167 = vmatprep.subr.mxu0 0.0
    %168 = vmatpush1.msra.mxu0 0.0
    %169 = vmatprep.subr.mxu0 0.0
    %170 = vmatpush1.msra.mxu0 0.0
    %171 = vmatprep.mubr.f32.mxu0 0.0
    %172 = vmatmul.mubr.f32.gmra.mrb[0].mxu0 %v102
    %v173 = vpop.f32.mrb[0].mxu0
    %v174 = vadd.f32 %v99, %v173
    %v175 = vpop.f32.mrb[0].mxu0
    %176 = vmatprep.mubr.f32.mxu0 0.0
    %177 = vmatmul.mubr.f32.gmra.mrb[0].mxu0 %v105
    %v178 = vpop.f32.mrb[0].mxu0
    %v179 = vadd.f32 %v99, %v178
    %v180 = vpop.f32.mrb[0].mxu0
    %181 = vdwg.mxu0
    %v182 = vmul.f32 %v174, 0.5
    %v183 = vmul.f32 %v179, 0.5
    %v184 = vmul.f32 %v174, %v174
    %v185 = vmul.f32 %v179, %v179
    %v186 = vmul.f32 %v184, %v174
    %v187 = vmul.f32 %v185, %v179
    %v188 = vmul.f32 %v186, 0.044715
    %v189 = vmul.f32 %v187, 0.044715
    %v190 = vadd.f32 %v174, %v188
    %v191 = vadd.f32 %v179, %v189
    %v192 = vmul.f32 %v190, 0.7978846
    %v193 = vmul.f32 %v191, 0.7978846
    %v194 = vtanh.pop %v192
    %v195 = vtanh.pop %v193
    %v196 = vadd.f32 %v194, 1.0
    %v197 = vadd.f32 %v195, 1.0
    %v198 = vmul.f32 %v182, %v196
    %v199 = vmul.f32 %v183, %v197
    %v200 = vld [vmem:[#allocation2] sm:$0xff]
    %v201 = vld [vmem:[#allocation2 + $0x8] sm:$0xff]
    %v202 = vld [vmem:[#allocation9] sm:$0xff]
    %v203 = vld [vmem:[#allocation9 + $0x8] sm:$0xff]
    %v204 = vld [vmem:[#allocation9 + $0x10] sm:$0xff]
    %v205 = vld [vmem:[#allocation9 + $0x18] sm:$0xff]
    %v206 = vld [vmem:[#allocation9 + $0x20] sm:$0xff]
    %v207 = vld [vmem:[#allocation9 + $0x28] sm:$0xff]
    %v208 = vld [vmem:[#allocation9 + $0x30] sm:$0xff]
    %v209 = vld [vmem:[#allocation9 + $0x38] sm:$0xff]
    %v210 = vld [vmem:[#allocation9 + $0x40] sm:$0xff]
    %v211 = vld [vmem:[#allocation9 + $0x48] sm:$0xff]
    %v212 = vld [vmem:[#allocation9 + $0x50] sm:$0xff]
    %v213 = vld [vmem:[#allocation9 + $0x58] sm:$0xff]
    %v214 = vld [vmem:[#allocation9 + $0x60] sm:$0xff]
    %v215 = vld [vmem:[#allocation9 + $0x68] sm:$0xff]
    %v216 = vld [vmem:[#allocation9 + $0x70] sm:$0xff]
    %v217 = vld [vmem:[#allocation9 + $0x78] sm:$0xff]
    %218 = vmatprep.subr.mxu0 0.0
    %219 = vmatpush1.msra.mxu0 %v202
    %220 = vmatprep.subr.mxu0 0.0
    %221 = vmatpush1.msra.mxu0 %v203
    %222 = vmatprep.subr.mxu0 0.0
    %223 = vmatpush1.msra.mxu0 %v204
    %224 = vmatprep.subr.mxu0 0.0
    %225 = vmatpush1.msra.mxu0 %v205
    %226 = vmatprep.subr.mxu0 0.0
    %227 = vmatpush1.msra.mxu0 %v206
    %228 = vmatprep.subr.mxu0 0.0
    %229 = vmatpush1.msra.mxu0 %v207
    %230 = vmatprep.subr.mxu0 0.0
    %231 = vmatpush1.msra.mxu0 %v208
    %232 = vmatprep.subr.mxu0 0.0
    %233 = vmatpush1.msra.mxu0 %v209
    %234 = vmatprep.subr.mxu0 0.0
    %235 = vmatpush1.msra.mxu0 %v210
    %236 = vmatprep.subr.mxu0 0.0
    %237 = vmatpush1.msra.mxu0 %v211
    %238 = vmatprep.subr.mxu0 0.0
    %239 = vmatpush1.msra.mxu0 %v212
    %240 = vmatprep.subr.mxu0 0.0
    %241 = vmatpush1.msra.mxu0 %v213
    %242 = vmatprep.subr.mxu0 0.0
    %243 = vmatpush1.msra.mxu0 %v214
    %244 = vmatprep.subr.mxu0 0.0
    %245 = vmatpush1.msra.mxu0 %v215
    %246 = vmatprep.subr.mxu0 0.0
    %247 = vmatpush1.msra.mxu0 %v216
    %248 = vmatprep.subr.mxu0 0.0
    %249 = vmatpush1.msra.mxu0 %v217
    %250 = vmatprep.subr.mxu0 0.0
    %251 = vmatpush1.msra.mxu0 0.0
    %252 = vmatprep.subr.mxu0 0.0
    %253 = vmatpush1.msra.mxu0 0.0
    %254 = vmatprep.subr.mxu0 0.0
    %255 = vmatpush1.msra.mxu0 0.0
    %256 = vmatprep.subr.mxu0 0.0
    %257 = vmatpush1.msra.mxu0 0.0
    %258 = vmatprep.subr.mxu0 0.0
    %259 = vmatpush1.msra.mxu0 0.0
    %260 = vmatprep.subr.mxu0 0.0
    %261 = vmatpush1.msra.mxu0 0.0
    %262 = vmatprep.subr.mxu0 0.0
    %263 = vmatpush1.msra.mxu0 0.0
    %264 = vmatprep.subr.mxu0 0.0
    %265 = vmatpush1.msra.mxu0 0.0
    %266 = vmatprep.subr.mxu0 0.0
    %267 = vmatpush1.msra.mxu0 0.0
    %268 = vmatprep.subr.mxu0 0.0
    %269 = vmatpush1.msra.mxu0 0.0
    %270 = vmatprep.subr.mxu0 0.0
    %271 = vmatpush1.msra.mxu0 0.0
    %272 = vmatprep.subr.mxu0 0.0
    %273 = vmatpush1.msra.mxu0 0.0
    %274 = vmatprep.subr.mxu0 0.0
    %275 = vmatpush1.msra.mxu0 0.0
    %276 = vmatprep.subr.mxu0 0.0
    %277 = vmatpush1.msra.mxu0 0.0
    %278 = vmatprep.subr.mxu0 0.0
    %279 = vmatpush1.msra.mxu0 0.0
    %280 = vmatprep.subr.mxu0 0.0
    %281 = vmatpush1.msra.mxu0 0.0
    %282 = vmatprep.mubr.f32.mxu0 0.0
    %283 = vmatmul.mubr.f32.gmra.mrb[0].mxu0 %v198
    %v284 = vpop.f32.mrb[0].mxu0
    %v285 = vadd.f32 0.0, %v284
    %v286 = vpop.f32.mrb[0].mxu0
    %287 = vmatprep.mubr.f32.mxu0 0.0
    %288 = vmatmul.mubr.f32.gmra.mrb[0].mxu0 %v199
    %v289 = vpop.f32.mrb[0].mxu0
    %v290 = vadd.f32 0.0, %v289
    %v291 = vpop.f32.mrb[0].mxu0
    %292 = vdwg.mxu0
    %v293 = vadd.f32 %v200, %v285
    %v294 = vadd.f32 %v201, %v290
    %295 = vst.msk [vmem:[#allocation2] sm:$0xff] %vm85, %v293
    %296 = vst.msk [vmem:[#allocation2 + $0x8] sm:$0xff] %vm85, %v294
    %v297 = vld [vmem:[#allocation2] sm:$0xff]
    %v298 = vld [vmem:[#allocation2 + $0x8] sm:$0xff]
    %v299 = vld [vmem:[#allocation11] sm:$0x1]
    %v301 = vlaneseq
    %v302 = vshrl.u32 %v301, 7
    %v303 = vsub.s32 0, %v302
    %v304 = vrot.slane %v299, %v303
    %v306 = vadd.f32 %v297, %v304
    %v307 = vadd.f32 %v298, %v304
    %308 = vst.msk [vmem:[#allocation12] sm:$0xff] %vm85, %v306
    %309 = vst.msk [vmem:[#allocation12 + $0x8] sm:$0xff] %vm85, %v307
    // Predicated region
    $region42: #{tpu_custom_call.1} parent=1 // pred_check
      _
    $region43: #{tpu_custom_call.1} parent=1 // pred_check_branch
      %311 = sbr.rel (0) target = $region45
    $region44: #{tpu_custom_call.1} parent=1 // pred_region
      %s313 = ssub.s32 256, 256
      %314 = vsyncadd [#allocation5], %s313
      %s315 = sshll.u32 [#allocation12], 4
      %s316 = int_to_ptr.vmem [resolvable:$true] %s315
      %321 = dma.vmem_to_hbm [thread:$0]  %s316, 256, %s5, [#allocation5], 128, 128, 8
    $region45: #{tpu_custom_call.1} parent=1 // pred_fallthru
      _
    // Predicated region
    $region46: #{tpu_custom_call.1} parent=1 // pred_check
      _
    $region47: #{tpu_custom_call.1} parent=1 // pred_check_branch
      %323 = sbr.rel (0) target = $region49
    $region48: #{tpu_custom_call.1} parent=1 // pred_region
      %324 = dma.done [#allocation5], 256
    $region49: #{tpu_custom_call.1} parent=1 // pred_fallthru
      _
    %325 = vsyncpa [#allocation4], 1
    %326 = vsyncpa [#allocation7], 1
    %327 = vsyncpa [#allocation10], 1
    %328 = vsyncpa [#allocation5], 1

</llo_original>
